<compile_context>
chip_gen: v6e
topology: v6e:2x2x1
jax: 0.10.0
libtpu: 0.0.40
codegen_flags: <defaults>
</compile_context>

<pallas_src>
import functools
import math

import jax
import jax.numpy as jnp
from jax.experimental import pallas as pl
from jax.experimental.pallas import tpu as pltpu


# ----------------------------------------------------------------------------
# Kernel
# ----------------------------------------------------------------------------
def _transp_conv_kernel(x_ref, w_ref, b_ref, o_ref):
    """One (batch, row-tile) grid step of ConvTranspose2d(kernel=2, stride=2).

    x_ref: (1, Cin, th*W)         NCHW input tile (channels=sublanes, pixels=lanes)
    w_ref: (2, Cin, 2*Cout)       w_ref[di, ci, dj*Cout + oc] = W[ci, oc, di, dj]
    b_ref: (1, 2*Cout)            bias tiled over dj (f32)
    o_ref: (1, th, 2, W, 2*Cout)  free view of the NHWC output rows 2*(h0+i)+di
    """
    _, th, _, w, two_cout = o_ref.shape
    x = x_ref[0]                           # (Cin, th*W)
    b = b_ref[...]                         # (1, 2*Cout), f32
    # Static 2-step unroll over the output-row phase di.
    for di in range(2):
        # MXU matmul contracting Cin (lhs dim 0) -> (th*W, 2*Cout), f32 acc.
        # TODO(synk): for tiny Cin (<=8) a VPU broadcast-FMA over Cin would
        # avoid MXU under-utilization; the op is HBM-bound either way.
        acc = jax.lax.dot_general(
            x, w_ref[di],
            dimension_numbers=(((0,), (0,)), ((), ())),
            preferred_element_type=jnp.float32)
        acc = acc + b
        # Leading-dim split only (minor dim untouched), then a clean store to
        # the di-th output-row phase of this block.
        o_ref[0, :, di, :, :] = acc.reshape(th, w, two_cout).astype(o_ref.dtype)


# ----------------------------------------------------------------------------
# Tiling / VMEM budgeting helpers
# ----------------------------------------------------------------------------
def _round_up(v, m):
    return ((v + m - 1) // m) * m


def _vmem_capacity_bytes():
    """Per-TensorCore VMEM capacity (v5e/v6e: 128 MiB, v7x: 64 MiB)."""
    try:
        info = pltpu.get_tpu_info()
        cap = getattr(info, "vmem_capacity_bytes", None)
        if cap:
            return int(cap)
    except Exception:
        pass
    return 64 << 20  # conservative default (= v7x)


def _estimate_vmem_bytes(th, W, Cin, Cout, in_bytes, out_bytes, weight_buffers):
    """Rough (padded) VMEM footprint of one pipelined grid step."""
    lanes_out = _round_up(2 * Cout, 128)
    x_blk = _round_up(Cin, 8) * _round_up(th * W, 128) * in_bytes
    y_blk = th * 2 * _round_up(W, 8) * lanes_out * out_bytes
    w_blk = 2 * _round_up(Cin, 8) * lanes_out * in_bytes
    b_blk = 8 * lanes_out * 4
    acc = 2 * _round_up(th * W, 8) * lanes_out * 4          # f32 temporaries
    return (2 * (x_blk + y_blk)                              # double-buffered
            + weight_buffers * (w_blk + b_blk)               # grid-invariant
            + acc
            + (2 << 20))                                     # compiler scratch


def _choose_tile_rows(N, H, W, Cin, Cout, in_bytes, out_bytes,
                      weight_buffers, budget):
    """Pick rows-per-grid-step.

    Legal th: th == H (input block minor dim == full H*W), or th divides H and
    th*W is a multiple of 128 (lane-aligned input block).  This replaces the
    old hard `assert M % tm == 0`.  Among legal tiles, take the largest that
    fits the VMEM budget, but keep >= 2 total grid steps so both v7x
    TensorCores (megacore) get work.
    """
    legal = {H}
    step = 128 // math.gcd(W, 128)
    t = step
    while t < H:
        if H % t == 0:
            legal.add(t)
        t += step
    legal = sorted(legal)

    def cost(th):
        return _estimate_vmem_bytes(th, W, Cin, Cout, in_bytes, out_bytes,
                                    weight_buffers)

    fitting = [t for t in legal if cost(t) <= budget]
    if not fitting:
        fitting = [legal[0]]
    th = max(fitting)
    if N * (H // th) < 2:
        alt = [t for t in fitting if H // t >= 2]
        if alt:
            th = max(alt)
    return th


# ----------------------------------------------------------------------------
# pl.Buffered(1) feature probe (single-buffer grid-invariant operands)
# ----------------------------------------------------------------------------
def _probe_copy_kernel(x_ref, o_ref):
    o_ref[...] = x_ref[...]


@functools.lru_cache(maxsize=None)
def _single_buffer_supported():
    """True iff `pipeline_mode=pl.Buffered(1)` lowers on this jax/Mosaic.

    Probed once with a tiny kernel so the real pallas_call can never fail
    because of it; if unsupported we simply keep default double-buffering.
    """
    if not hasattr(pl, "Buffered"):
        return False
    try:
        spec = pl.BlockSpec((8, 128), lambda i: (0, 0),
                            pipeline_mode=pl.Buffered(1))
        fn = pl.pallas_call(
            _probe_copy_kernel,
            out_shape=jax.ShapeDtypeStruct((8, 128), jnp.float32),
            grid=(2,),
            in_specs=[spec],
            out_specs=pl.BlockSpec((8, 128), lambda i: (0, 0)),
        )
        jax.jit(fn).lower(jnp.zeros((8, 128), jnp.float32)).compile()
        return True
    except Exception:
        return False


# ----------------------------------------------------------------------------
# Public wrappers
# ----------------------------------------------------------------------------
def upsample_block_transp_conv_nhwc_out(x_nchw, weight, bias, *,
                                        compute_dtype=None,
                                        out_dtype=None,
                                        vmem_budget_bytes=None):
    """ConvTranspose2d(in_c, out_c, k=2, s=2); NCHW input, NHWC output.

    x_nchw : (N, Cin, H, W)
    weight : (Cin, Cout, 2, 2)   (PyTorch ConvTranspose2d layout)
    bias   : (Cout,)
    returns: (N, 2H, 2W, Cout)   NHWC (fast path: no XLA layout copies)

    compute_dtype: cast x / weight to this for the matmul (e.g. jnp.bfloat16
    to halve HBM traffic on v6e/v7x); accumulation is always f32.
    """
    N, Cin, H, W = x_nchw.shape
    w_cin, Cout, kh, kw = weight.shape
    assert (w_cin, kh, kw) == (Cin, 2, 2), "weight must be (Cin, Cout, 2, 2)"
    assert bias.shape == (Cout,)

    cdt = compute_dtype if compute_dtype is not None else x_nchw.dtype
    odt = out_dtype if out_dtype is not None else x_nchw.dtype

    # ---- operand prep: free reshapes / tiny parameter shuffles only --------
    x3 = x_nchw.reshape(N, Cin, H * W).astype(cdt)          # free view of NCHW
    # w_k[di, ci, dj*Cout + oc] = weight[ci, oc, di, dj]   (parameter-sized)
    w_k = jnp.transpose(weight, (2, 0, 3, 1)).reshape(2, Cin, 2 * Cout).astype(cdt)
    b_k = jnp.tile(bias.astype(jnp.float32), (2,)).reshape(1, 2 * Cout)

    in_bytes = jnp.dtype(cdt).itemsize
    out_bytes = jnp.dtype(odt).itemsize

    # ---- per-generation tile sizing & VMEM limit ----------------------------
    cap = _vmem_capacity_bytes()
    budget = vmem_budget_bytes or min(int(cap * 0.5), 96 << 20)
    wbufs = 1 if _single_buffer_supported() else 2
    th = _choose_tile_rows(N, H, W, Cin, Cout, in_bytes, out_bytes, wbufs, budget)
    grid = (N, H // th)

    est = _estimate_vmem_bytes(th, W, Cin, Cout, in_bytes, out_bytes, wbufs)
    vmem_limit = int(min(max(budget, est + (4 << 20)), int(cap * 0.9)))

    const_kwargs = dict(pipeline_mode=pl.Buffered(1)) if wbufs == 1 else {}

    in_specs = [
        # Streamed NCHW input tile: (1, Cin, th*W), channels on sublanes.
        pl.BlockSpec((1, Cin, th * W), lambda n, h: (n, 0, h)),
        # Grid-invariant weight / bias (single-buffered when supported).
        pl.BlockSpec((2, Cin, 2 * Cout), lambda n, h: (0, 0, 0), **const_kwargs),
        pl.BlockSpec((1, 2 * Cout), lambda n, h: (0, 0), **const_kwargs),
    ]
    # (N, H, 2, W, 2*Cout) is a free contiguous reshape of NHWC (N,2H,2W,Cout).
    out_spec = pl.BlockSpec((1, th, 2, W, 2 * Cout),
                            lambda n, h: (n, h, 0, 0, 0))

    flops = 2 * N * H * W * Cin * 4 * Cout
    bytes_accessed = (x3.size * in_bytes + w_k.size * in_bytes + b_k.size * 4
                      + N * H * 2 * W * 2 * Cout * out_bytes)

    # TODO(synk): for very large channel counts (Cin*4*Cout weight >> VMEM
    # budget) add a channel grid axis; not needed for typical U-Net sizes.
    y5 = pl.pallas_call(
        _transp_conv_kernel,
        out_shape=jax.ShapeDtypeStruct((N, H, 2, W, 2 * Cout), odt),
        grid_spec=pltpu.PrefetchScalarGridSpec(
            num_scalar_prefetch=0,
            grid=grid,
            in_specs=in_specs,
            out_specs=out_spec),
        compiler_params=pltpu.CompilerParams(
            dimension_semantics=("parallel", "parallel"),
            vmem_limit_bytes=vmem_limit),
        cost_estimate=pl.CostEstimate(flops=flops, transcendentals=0,
                                      bytes_accessed=bytes_accessed),
    )(x3, w_k, b_k)

    return y5.reshape(N, 2 * H, 2 * W, Cout)                # free reshape


def upsample_block_transp_conv(x_nchw, weight, bias, **kwargs):
    """PyTorch-parity entry point: NCHW in -> NCHW out.

    The NHWC->NCHW transpose of the result is the one unavoidable layout copy
    when the caller insists on NCHW; use upsample_block_transp_conv_nhwc_out
    to skip it entirely.
    """
    y_nhwc = upsample_block_transp_conv_nhwc_out(x_nchw, weight, bias, **kwargs)
    return jnp.transpose(y_nhwc, (0, 3, 1, 2))


# ----------------------------------------------------------------------------
# Pure-JAX reference (validation)
# ----------------------------------------------------------------------------
def _reference_transp_conv(x_nchw, weight, bias):
    """Plain-JAX reference of ConvTranspose2d(k=2, s=2)."""
    N, Cin, H, W = x_nchw.shape
    Cout = weight.shape[1]
    y = jnp.einsum('ncij,codk->noidjk', x_nchw, weight)      # (N,Cout,H,2,W,2)
    y = y.reshape(N, Cout, 2 * H, 2 * W)
    return y + bias[None, :, None, None]


# ----------------------------------------------------------------------------
# Demo / correctness check
# ----------------------------------------------------------------------------
if __name__ == "__main__":
    key = jax.random.PRNGKey(0)
    k_x, k_w, k_b = jax.random.split(key, 3)

    N, Cin, Cout, H, W = 2, 4, 8, 16, 16

    x = jax.random.normal(k_x, (N, Cin, H, W), dtype=jnp.float32)
    fan_in = Cin * 2 * 2
    bound = 1.0 / jnp.sqrt(fan_in)
    weight = jax.random.uniform(k_w, (Cin, Cout, 2, 2), jnp.float32,
                                minval=-bound, maxval=bound)
    bias = jax.random.uniform(k_b, (Cout,), jnp.float32,
                              minval=-bound, maxval=bound)

    ref = _reference_transp_conv(x, weight, bias)

    # 1) f32 path, NCHW API (PyTorch parity) -- strict check.
    out = jax.block_until_ready(upsample_block_transp_conv(x, weight, bias))
    assert out.shape == (N, Cout, 2 * H, 2 * W), out.shape
    assert jnp.allclose(out, ref, atol=1e-5, rtol=1e-5), "f32 NCHW mismatch"

    # 2) NHWC fast path (no layout copies) -- same numbers, NHWC layout.
    out_nhwc = jax.block_until_ready(
        upsample_block_transp_conv_nhwc_out(x, weight, bias))
    assert out_nhwc.shape == (N, 2 * H, 2 * W, Cout), out_nhwc.shape
    assert jnp.allclose(jnp.transpose(out_nhwc, (0, 3, 1, 2)), ref,
                        atol=1e-5, rtol=1e-5), "NHWC fast path mismatch"

    # 3) bf16 operands (f32 accumulate) -- halves HBM traffic on v6e/v7x.
    out_bf16 = jax.block_until_ready(
        upsample_block_transp_conv(x, weight, bias,
                                   compute_dtype=jnp.bfloat16))
    assert jnp.allclose(out_bf16, ref, atol=3e-2, rtol=3e-2), "bf16 mismatch"

    print("KERNEL_OK")
</pallas_src>

<mosaic_0001>
module attributes {stable_mosaic.version = 11 : i64} {
  func.func @_transp_conv_kernel(%arg0: i32, %arg1: i32, %arg2: memref<1x4x256xf32, #tpu.memory_space<vmem>>, %arg3: memref<2x4x16xf32, #tpu.memory_space<vmem>>, %arg4: memref<1x16xf32, #tpu.memory_space<vmem>>, %arg5: memref<1x16x2x16x16xf32, #tpu.memory_space<vmem>>) attributes {dimension_semantics = [#tpu.dimension_semantics<parallel>, #tpu.dimension_semantics<parallel>], iteration_bounds = array<i64: 2, 1>, scalar_prefetch = 0 : i64, scratch_operands = 0 : i64, tpu.core_type = #tpu.core_type<tc>, window_params = [{transform_indices = @transform_0, window_bounds = array<i64: 1, 4, 256>}, {pipeline_mode = #tpu.pipeline_mode<synchronous>, transform_indices = @transform_1, window_bounds = array<i64: 2, 4, 16>}, {pipeline_mode = #tpu.pipeline_mode<synchronous>, transform_indices = @transform_2, window_bounds = array<i64: 1, 16>}, {transform_indices = @transform_3, window_bounds = array<i64: 1, 16, 2, 16, 16>}]} {
    %c0 = arith.constant 0 : index
    %c0_0 = arith.constant 0 : index
    %c0_1 = arith.constant 0 : index
    %0 = vector.load %arg2[%c0, %c0_0, %c0_1] : memref<1x4x256xf32, #tpu.memory_space<vmem>>, vector<1x4x256xf32>
    %1 = vector.shape_cast %0 : vector<1x4x256xf32> to vector<4x256xf32>
    %c0_2 = arith.constant 0 : index
    %c0_3 = arith.constant 0 : index
    %2 = vector.load %arg4[%c0_2, %c0_3] : memref<1x16xf32, #tpu.memory_space<vmem>>, vector<1x16xf32>
    %c0_4 = arith.constant 0 : index
    %c0_5 = arith.constant 0 : index
    %c0_6 = arith.constant 0 : index
    %3 = vector.load %arg3[%c0_4, %c0_5, %c0_6] : memref<2x4x16xf32, #tpu.memory_space<vmem>>, vector<1x4x16xf32>
    %4 = vector.shape_cast %3 : vector<1x4x16xf32> to vector<4x16xf32>
    %cst = arith.constant dense<0.000000e+00> : vector<256x16xf32>
    %5 = tpu.matmul %1, %4, %cst {dimension_numbers = #tpu.dot_dimension_numbers<[0], [0], [1], [1], [0, 1, 1, 1], [], []>} : vector<4x256xf32>, vector<4x16xf32>, vector<256x16xf32> -> vector<256x16xf32>
    %6 = vector.broadcast %2 : vector<1x16xf32> to vector<256x16xf32>
    %7 = arith.addf %5, %6 : vector<256x16xf32>
    %8 = vector.shape_cast %7 : vector<256x16xf32> to vector<16x16x16xf32>
    %c0_7 = arith.constant 0 : index
    %c0_8 = arith.constant 0 : index
    %c0_9 = arith.constant 0 : index
    %c0_10 = arith.constant 0 : index
    %c0_11 = arith.constant 0 : index
    %9 = vector.load %arg5[%c0_7, %c0_8, %c0_9, %c0_10, %c0_11] : memref<1x16x2x16x16xf32, #tpu.memory_space<vmem>>, vector<1x16x1x16x16xf32>
    %10 = vector.shape_cast %9 : vector<1x16x1x16x16xf32> to vector<16x16x16xf32>
    %11 = vector.shape_cast %8 : vector<16x16x16xf32> to vector<1x16x1x16x16xf32>
    tpu.vector_store %arg5[%c0_7, %c0_8, %c0_9, %c0_10, %c0_11], %11 {strides = array<i32>} : memref<1x16x2x16x16xf32, #tpu.memory_space<vmem>>, vector<1x16x1x16x16xf32>,
    %c1 = arith.constant 1 : index
    %c0_12 = arith.constant 0 : index
    %c0_13 = arith.constant 0 : index
    %12 = vector.load %arg3[%c1, %c0_12, %c0_13] : memref<2x4x16xf32, #tpu.memory_space<vmem>>, vector<1x4x16xf32>
    %13 = vector.shape_cast %12 : vector<1x4x16xf32> to vector<4x16xf32>
    %cst_14 = arith.constant dense<0.000000e+00> : vector<256x16xf32>
    %14 = tpu.matmul %1, %13, %cst_14 {dimension_numbers = #tpu.dot_dimension_numbers<[0], [0], [1], [1], [0, 1, 1, 1], [], []>} : vector<4x256xf32>, vector<4x16xf32>, vector<256x16xf32> -> vector<256x16xf32>
    %15 = vector.broadcast %2 : vector<1x16xf32> to vector<256x16xf32>
    %16 = arith.addf %14, %15 : vector<256x16xf32>
    %17 = vector.shape_cast %16 : vector<256x16xf32> to vector<16x16x16xf32>
    %c0_15 = arith.constant 0 : index
    %c0_16 = arith.constant 0 : index
    %c1_17 = arith.constant 1 : index
    %c0_18 = arith.constant 0 : index
    %c0_19 = arith.constant 0 : index
    %18 = vector.load %arg5[%c0_15, %c0_16, %c1_17, %c0_18, %c0_19] : memref<1x16x2x16x16xf32, #tpu.memory_space<vmem>>, vector<1x16x1x16x16xf32>
    %19 = vector.shape_cast %18 : vector<1x16x1x16x16xf32> to vector<16x16x16xf32>
    %20 = vector.shape_cast %17 : vector<16x16x16xf32> to vector<1x16x1x16x16xf32>
    tpu.vector_store %arg5[%c0_15, %c0_16, %c1_17, %c0_18, %c0_19], %20 {strides = array<i32>} : memref<1x16x2x16x16xf32, #tpu.memory_space<vmem>>, vector<1x16x1x16x16xf32>,
    return
  }
  func.func @transform_0(%arg0: i32, %arg1: i32) -> (i32, i32, i32) {
    %c0_i32 = arith.constant 0 : i32
    %c0_i32_0 = arith.constant 0 : i32
    return %arg0, %c0_i32, %arg1 : i32, i32, i32
  }
  func.func @transform_1(%arg0: i32, %arg1: i32) -> (i32, i32, i32) {
    %c0_i32 = arith.constant 0 : i32
    %c0_i32_0 = arith.constant 0 : i32
    %c0_i32_1 = arith.constant 0 : i32
    %c0_i32_2 = arith.constant 0 : i32
    return %c0_i32, %c0_i32_0, %c0_i32_1 : i32, i32, i32
  }
  func.func @transform_2(%arg0: i32, %arg1: i32) -> (i32, i32) {
    %c0_i32 = arith.constant 0 : i32
    %c0_i32_0 = arith.constant 0 : i32
    %c0_i32_1 = arith.constant 0 : i32
    return %c0_i32, %c0_i32_0 : i32, i32
  }
  func.func @transform_3(%arg0: i32, %arg1: i32) -> (i32, i32, i32, i32, i32) {
    %c0_i32 = arith.constant 0 : i32
    %c0_i32_0 = arith.constant 0 : i32
    %c0_i32_1 = arith.constant 0 : i32
    %c0_i32_2 = arith.constant 0 : i32
    return %arg0, %arg1, %c0_i32, %c0_i32_0, %c0_i32_1 : i32, i32, i32, i32, i32
  }
}

</mosaic_0001>

<llo_original>
// kernel: tpu_custom_call.1
$region0: #{tpu_custom_call.1}
  #allocation0 [shape = 'u32[]', space=smem, size = 0x4, offset = 0x4, fixed_abs, tag = 'smem constant byte address 0x4 - core index']
  #allocation1 [shape = 'u32[144,128]{1,0:T(1,128)}', space=vmem, size = 0x12000, scoped, tag = 'internal scratch']
  %s0 = inlined_call_operand.hbm [shape: f32[2,4,256], index: 0, kind: input, shape index: {}]
  %s1 = inlined_call_operand.hbm [shape: f32[2,4,16], index: 1, kind: input, shape index: {}]
  %s2 = inlined_call_operand.vmem [shape: f32[1,16], index: 2, kind: input, shape index: {}]
  %s3 = inlined_call_operand.hbm [shape: f32[2,16,2,16,16], index: 3, kind: output, shape index: {}]
  %s4 = sld [smem:[#allocation0]]
  $region53: #{tpu_custom_call.1} parent=0
    _
  %s6 = ssub.s32 1, %s4
  %s7 = scalar_select 0, %s6, %s4
  $region1: #{tpu_custom_call.1} parent=0
    #allocation2 [shape = 'u8[8192]{0}', space=vmem, size = 0x2000, scoped, tag = 'input window, operand 0']
    #allocation3 [shape = 's32[2]{0}', space=sflag, size = 0x8, scoped, tag = 'scoped memory for tpu_custom_call.1']
    #allocation4 [shape = 's32[2]{0}', space=sflag, size = 0x8, scoped, tag = 'scoped memory for tpu_custom_call.1']
    #allocation5 [shape = 'u8[4096]{0}', space=vmem, size = 0x1000, scoped, tag = 'input window, operand 1, single buffered']
    #allocation6 [shape = 's32[1]{0}', space=sflag, size = 0x4, scoped, tag = 'scoped memory for tpu_custom_call.1']
    #allocation7 [shape = 'u8[524288]{0}', space=vmem, size = 0x80000, scoped, tag = 'output window, operand 0']
    %8 = vsyncpa [#allocation3], 0
    %s9 = scalar_lea.sflag [#allocation3], 1
    %10 = vsyncpa %s9, 0
    %11 = vsyncpa [#allocation6], 0
    %12 = vsyncpa [#allocation4], 0
    %s13 = scalar_lea.sflag [#allocation4], 1
    %14 = vsyncpa %s13, 0
    loop: start=0, step=1, limit=4
    $region2: #{tpu_custom_call.1} parent=1 // loop_pre_header
      _
    $region3: #{tpu_custom_call.1} parent=1 // loop_header
      %s16 = sphi 0, %s20
      %p17 = scmp.ge.s32.totalorder %s16, 4
      %s23 = sphi 0, %s35
      %s24 = sphi 0, %s31
      %s25 = sphi 0, %s23
      %s26 = sphi 0, %s24
      %s27 = sphi 0, %s25
      %s28 = sphi 0, %s26
      %s40 = sphi 0, %s42
      %s43 = sphi 0, %s40
      %s44 = sphi 0, %s43
      %s60 = sphi 0, %s44
      %s64 = sphi 0, %s64
      %s66 = sphi 0, %s64
      %s67 = sphi 0, %s66
      %s81 = sphi 0, %s67
      %s85 = sphi 0, %s85
      %s87 = sphi 0, %s85
      %s88 = sphi 0, %s87
      %s102 = sphi 0, %s88
      %s110 = sphi 0, %s112
      %s113 = sphi 0, %s110
      %s114 = sphi 0, %s113
      %s130 = sphi 0, %s114
    $region4: #{tpu_custom_call.1} parent=1 // loop_header_branch
      %19 = sbr.rel (%p17) target = $region8
    $region5: #{tpu_custom_call.1} parent=1 // loop_body
      %s21 = ssub.s32 %s16, 1
      %s22 = ssub.s32 %s16, 2
      %s29 = sadd.s32 1, %s24
      %p30 = scmp.ge.s32.totalorder %s29, 1
      %s31 = scalar_select %p30, 0, %s29
      %s32 = sadd.s32 1, %s23
      %s33 = scalar_select %p30, %s32, %s23
      %p34 = scmp.ge.s32.totalorder %s33, 2
      %s35 = scalar_select %p34, 0, %s33
      %s36 = ssub.s32 %s23, %s35
      %s37 = ssub.s32 %s24, %s31
      %s38 = sor.u32 %s36, %s37
      %p39 = scmp.eq.s32.totalorder %s38, 0
      %s41 = sadd.s32 %s40, 1
      %s42 = scalar_select %p39, %s40, %s41
      %p45 = pneg %p39
      %p46 = scmp.eq.s32.totalorder %s16, 1
      %p47 = por %p45, %p46
      %p48 = scmp.ne.s32.totalorder %s40, %s43
      %p49 = scmp.eq.s32.totalorder %s16, 0
      %p50 = por %p48, %p49
      %p51 = scmp.ne.s32.totalorder %s40, %s43
      %p52 = scmp.eq.s32.totalorder %s21, 1
      %p53 = por %p51, %p52
      %p54 = scmp.ne.s32.totalorder %s43, %s44
      %p55 = scmp.eq.s32.totalorder %s21, 0
      %p56 = por %p54, %p55
      %p57 = scmp.ne.s32.totalorder %s43, %s44
      %p58 = scmp.eq.s32.totalorder %s22, 1
      %p59 = por %p57, %p58
      %p61 = scmp.ne.s32.totalorder %s44, %s60
      %p62 = scmp.eq.s32.totalorder %s22, 0
      %p63 = por %p61, %p62
      %s65 = sadd.s32 %s64, 1
      %p68 = scmp.eq.s32.totalorder %s16, 1
      %p69 = scmp.ne.s32.totalorder %s64, %s66
      %p70 = scmp.eq.s32.totalorder %s16, 0
      %p71 = por %p69, %p70
      %p72 = scmp.ne.s32.totalorder %s64, %s66
      %p73 = scmp.eq.s32.totalorder %s21, 1
      %p74 = por %p72, %p73
      %p75 = scmp.ne.s32.totalorder %s66, %s67
      %p76 = scmp.eq.s32.totalorder %s21, 0
      %p77 = por %p75, %p76
      %p78 = scmp.ne.s32.totalorder %s66, %s67
      %p79 = scmp.eq.s32.totalorder %s22, 1
      %p80 = por %p78, %p79
      %p82 = scmp.ne.s32.totalorder %s67, %s81
      %p83 = scmp.eq.s32.totalorder %s22, 0
      %p84 = por %p82, %p83
      %s86 = sadd.s32 %s85, 1
      %p89 = scmp.eq.s32.totalorder %s16, 1
      %p90 = scmp.ne.s32.totalorder %s85, %s87
      %p91 = scmp.eq.s32.totalorder %s16, 0
      %p92 = por %p90, %p91
      %p93 = scmp.ne.s32.totalorder %s85, %s87
      %p94 = scmp.eq.s32.totalorder %s21, 1
      %p95 = por %p93, %p94
      %p96 = scmp.ne.s32.totalorder %s87, %s88
      %p97 = scmp.eq.s32.totalorder %s21, 0
      %p98 = por %p96, %p97
      %p99 = scmp.ne.s32.totalorder %s87, %s88
      %p100 = scmp.eq.s32.totalorder %s22, 1
      %p101 = por %p99, %p100
      %p103 = scmp.ne.s32.totalorder %s88, %s102
      %p104 = scmp.eq.s32.totalorder %s22, 0
      %p105 = por %p103, %p104
      %s106 = ssub.s32 %s23, %s35
      %s107 = ssub.s32 %s24, %s31
      %s108 = sor.u32 %s106, %s107
      %p109 = scmp.eq.s32.totalorder %s108, 0
      %s111 = sadd.s32 %s110, 1
      %s112 = scalar_select %p109, %s110, %s111
      %p115 = pneg %p109
      %p116 = scmp.eq.s32.totalorder %s16, 1
      %p117 = por %p115, %p116
      %p118 = scmp.ne.s32.totalorder %s110, %s113
      %p119 = scmp.eq.s32.totalorder %s16, 0
      %p120 = por %p118, %p119
      %p121 = scmp.ne.s32.totalorder %s110, %s113
      %p122 = scmp.eq.s32.totalorder %s21, 1
      %p123 = por %p121, %p122
      %p124 = scmp.ne.s32.totalorder %s113, %s114
      %p125 = scmp.eq.s32.totalorder %s21, 0
      %p126 = por %p124, %p125
      %p127 = scmp.ne.s32.totalorder %s113, %s114
      %p128 = scmp.eq.s32.totalorder %s22, 1
      %p129 = por %p127, %p128
      %p131 = scmp.ne.s32.totalorder %s114, %s130
      %p132 = scmp.eq.s32.totalorder %s22, 0
      %p133 = por %p131, %p132
      %p134 = scmp.le.s32.totalorder 1, %s16
      %p135 = scmp.lt.s32.totalorder %s16, 3
      %p136 = pnand %p134, %p135
      %p137 = pneg %p136
      // Predicated region
      $region9: #{tpu_custom_call.1} parent=5 // pred_check
        _
      $region10: #{tpu_custom_call.1} parent=5 // pred_check_branch
        %139 = sbr.rel (%p136) target = $region12
      $region11: #{tpu_custom_call.1} parent=5 // pred_region
        %s140 = ssub.s32 %s16, 1
        // Predicated region
        $region13: #{tpu_custom_call.1} parent=11 // pred_check
          %p141 = pneg %p77
        $region14: #{tpu_custom_call.1} parent=11 // pred_check_branch
          %143 = sbr.rel (%p141) target = $region16
        $region15: #{tpu_custom_call.1} parent=11 // pred_region
          %s145 = ssub.s32 128, 128
          %146 = vsyncadd [#allocation6], %s145
          %s147 = sshll.u32 [#allocation5], 4
          %s148 = int_to_ptr.vmem [resolvable:$true] %s147
          %153 = dma.hbm_to_vmem [thread:$0]  %s1, 128, %s148, [#allocation6], 64, 64, 4
        $region16: #{tpu_custom_call.1} parent=11 // pred_fallthru
          _
        // Predicated region
        $region17: #{tpu_custom_call.1} parent=11 // pred_check
          %p154 = pneg %p98
        $region18: #{tpu_custom_call.1} parent=11 // pred_check_branch
          %156 = sbr.rel (%p154) target = $region20
        $region19: #{tpu_custom_call.1} parent=11 // pred_region
          _
        $region20: #{tpu_custom_call.1} parent=11 // pred_fallthru
          _
      $region12: #{tpu_custom_call.1} parent=5 // pred_fallthru
        _
      %p157 = scmp.lt.s32.totalorder %s16, 2
      // Predicated region
      $region21: #{tpu_custom_call.1} parent=5 // pred_check
        %p158 = pneg %p157
      $region22: #{tpu_custom_call.1} parent=5 // pred_check_branch
        %160 = sbr.rel (%p158) target = $region24
      $region23: #{tpu_custom_call.1} parent=5 // pred_region
        // Predicated region
        $region25: #{tpu_custom_call.1} parent=23 // pred_check
          %p161 = pneg %p50
        $region26: #{tpu_custom_call.1} parent=23 // pred_check_branch
          %163 = sbr.rel (%p161) target = $region28
        $region27: #{tpu_custom_call.1} parent=23 // pred_region
          %s164 = sand.u32 %s40, 1
          %s165 = scalar_lea.sflag [#allocation3], %s164
          %s166 = sand.u32 %s40, 1
          %s167 = smul.addr %s166, 8
          %s168 = scalar_lea.vmem [#allocation2], %s167
          %s169 = smul.u32 2, %s24
          %s171 = ssub.s32 128, 128
          %172 = vsyncadd %s165, %s171
          %s173 = smul.addr %s23, 2
          %s174 = sadd.s32 %s169, %s173
          %s175 = smul.addr %s174, 64
          %s176 = scalar_lea.hbm %s0, %s175
          %s178 = sshll.u32 %s168, 4
          %s179 = int_to_ptr.vmem [resolvable:$true] %s178
          %181 = dma.hbm_to_vmem [thread:$0]  %s176, 128, %s179, %s165
        $region28: #{tpu_custom_call.1} parent=23 // pred_fallthru
          _
      $region24: #{tpu_custom_call.1} parent=5 // pred_fallthru
        _
      %p182 = scmp.le.s32.totalorder 1, %s16
      %p183 = scmp.lt.s32.totalorder %s16, 3
      %p184 = pnand %p182, %p183
      %p185 = pneg %p184
      // Predicated region
      $region29: #{tpu_custom_call.1} parent=5 // pred_check
        _
      $region30: #{tpu_custom_call.1} parent=5 // pred_check_branch
        %187 = sbr.rel (%p184) target = $region32
      $region31: #{tpu_custom_call.1} parent=5 // pred_region
        %s188 = ssub.s32 %s16, 1
        %s189 = sand.u32 %s43, 1
        %s190 = scalar_lea.sflag [#allocation3], %s189
        %s191 = sand.u32 %s43, 1
        %s192 = smul.addr %s191, 8
        %s193 = scalar_lea.vmem [#allocation2], %s192
        // Predicated region
        $region33: #{tpu_custom_call.1} parent=31 // pred_check
          %p194 = pneg %p56
        $region34: #{tpu_custom_call.1} parent=31 // pred_check_branch
          %196 = sbr.rel (%p194) target = $region36
        $region35: #{tpu_custom_call.1} parent=31 // pred_region
          %197 = dma.done %s190, 128
        $region36: #{tpu_custom_call.1} parent=31 // pred_fallthru
          _
        // Predicated region
        $region37: #{tpu_custom_call.1} parent=31 // pred_check
          %p198 = pneg %p77
        $region38: #{tpu_custom_call.1} parent=31 // pred_check_branch
          %200 = sbr.rel (%p198) target = $region40
        $region39: #{tpu_custom_call.1} parent=31 // pred_region
          %201 = dma.done [#allocation6], 128
        $region40: #{tpu_custom_call.1} parent=31 // pred_fallthru
          _
        %s202 = sand.u32 %s43, 1
        %s203 = scalar_lea.sflag [#allocation3], %s202
        %s204 = sand.u32 %s43, 1
        %s205 = smul.addr %s204, 8
        %s206 = scalar_lea.vmem [#allocation2], %s205
        %p207 = pneg %p56
        %p208 = pneg %p53
        %p209 = pneg %p77
        %p210 = pneg %p74
        %p211 = pneg %p98
        %p212 = pneg %p95
        %p213 = pneg %p126
        %p214 = pneg %p123
        %s215 = sand.u32 %s113, 1
        %s216 = scalar_lea.sflag [#allocation4], %s215
        %s217 = sand.u32 %s113, 1
        %s218 = smul.addr %s217, 512
        %s219 = scalar_lea.vmem [#allocation7], %s218
        %s220 = smul.u32 2, %s26
        %s221 = smul.u32 16, %s26
        %v222 = vld [vmem:[%s193] sm:$0xff]
        %v223 = vld [vmem:[%s2] sm:$0x1]
        %v224 = vld [vmem:[#allocation5] sm:$0xf]
        %v226 = vlaneseq
        %v227 = vshrl.u32 %v226, 7
        %v228 = vsub.s32 0, %v227
        %v229 = vrot.slane %v223, %v228
        %v232 = vcombine.high %v222, %v222
        %234 = vxpose.xlu0.b32.start [1/16] %v222, 128
        %235 = vxpose.xlu0.b32.cont [2/16] 0.0, 128
        %236 = vxpose.xlu0.b32.cont [3/16] 0.0, 128
        %237 = vxpose.xlu0.b32.cont [4/16] 0.0, 128
        %238 = vxpose.xlu0.b32.cont [5/16] 0.0, 128
        %239 = vxpose.xlu0.b32.cont [6/16] 0.0, 128
        %240 = vxpose.xlu0.b32.cont [7/16] 0.0, 128
        %241 = vxpose.xlu0.b32.cont [8/16] 0.0, 128
        %242 = vxpose.xlu0.b32.cont [9/16] 0.0, 128
        %243 = vxpose.xlu0.b32.cont [10/16] 0.0, 128
        %244 = vxpose.xlu0.b32.cont [11/16] 0.0, 128
        %245 = vxpose.xlu0.b32.cont [12/16] 0.0, 128
        %246 = vxpose.xlu0.b32.cont [13/16] 0.0, 128
        %247 = vxpose.xlu0.b32.cont [14/16] 0.0, 128
        %248 = vxpose.xlu0.b32.cont [15/16] 0.0, 128
        %249 = vxpose.xlu0.b32.end [16/16] 0.0, 128
        %v250 = vpop.trf.xlu0
        %v251 = vpop.trf.xlu0
        %v252 = vpop.trf.xlu0
        %v253 = vpop.trf.xlu0
        %v254 = vpop.trf.xlu0
        %v255 = vpop.trf.xlu0
        %v256 = vpop.trf.xlu0
        %v257 = vpop.trf.xlu0
        %v258 = vpop.trf.xlu0
        %v259 = vpop.trf.xlu0
        %v260 = vpop.trf.xlu0
        %v261 = vpop.trf.xlu0
        %v262 = vpop.trf.xlu0
        %v263 = vpop.trf.xlu0
        %v264 = vpop.trf.xlu0
        %v265 = vpop.trf.xlu0
        %266 = vxpose.xlu0.b32.start [1/16] %v232, 128
        %267 = vxpose.xlu0.b32.cont [2/16] 0.0, 128
        %268 = vxpose.xlu0.b32.cont [3/16] 0.0, 128
        %269 = vxpose.xlu0.b32.cont [4/16] 0.0, 128
        %270 = vxpose.xlu0.b32.cont [5/16] 0.0, 128
        %271 = vxpose.xlu0.b32.cont [6/16] 0.0, 128
        %272 = vxpose.xlu0.b32.cont [7/16] 0.0, 128
        %273 = vxpose.xlu0.b32.cont [8/16] 0.0, 128
        %274 = vxpose.xlu0.b32.cont [9/16] 0.0, 128
        %275 = vxpose.xlu0.b32.cont [10/16] 0.0, 128
        %276 = vxpose.xlu0.b32.cont [11/16] 0.0, 128
        %277 = vxpose.xlu0.b32.cont [12/16] 0.0, 128
        %278 = vxpose.xlu0.b32.cont [13/16] 0.0, 128
        %279 = vxpose.xlu0.b32.cont [14/16] 0.0, 128
        %280 = vxpose.xlu0.b32.cont [15/16] 0.0, 128
        %281 = vxpose.xlu0.b32.end [16/16] 0.0, 128
        %v282 = vpop.trf.xlu0
        %v283 = vpop.trf.xlu0
        %v284 = vpop.trf.xlu0
        %v285 = vpop.trf.xlu0
        %v286 = vpop.trf.xlu0
        %v287 = vpop.trf.xlu0
        %v288 = vpop.trf.xlu0
        %v289 = vpop.trf.xlu0
        %v290 = vpop.trf.xlu0
        %v291 = vpop.trf.xlu0
        %v292 = vpop.trf.xlu0
        %v293 = vpop.trf.xlu0
        %v294 = vpop.trf.xlu0
        %v295 = vpop.trf.xlu0
        %v296 = vpop.trf.xlu0
        %v297 = vpop.trf.xlu0
        %vm298 = vcmask 31744
        %v300 = vsel %vm298, %v250, 0
        %v303 = vsel %vm298, %v251, 0
        %v306 = vsel %vm298, %v252, 0
        %v309 = vsel %vm298, %v253, 0
        %v312 = vsel %vm298, %v254, 0
        %v315 = vsel %vm298, %v255, 0
        %v318 = vsel %vm298, %v256, 0
        %v321 = vsel %vm298, %v257, 0
        %v324 = vsel %vm298, %v258, 0
        %v327 = vsel %vm298, %v259, 0
        %v330 = vsel %vm298, %v260, 0
        %v333 = vsel %vm298, %v261, 0
        %v336 = vsel %vm298, %v262, 0
        %v339 = vsel %vm298, %v263, 0
        %v342 = vsel %vm298, %v264, 0
        %v345 = vsel %vm298, %v265, 0
        %v348 = vsel %vm298, %v282, 0
        %v351 = vsel %vm298, %v283, 0
        %v354 = vsel %vm298, %v284, 0
        %v357 = vsel %vm298, %v285, 0
        %v360 = vsel %vm298, %v286, 0
        %v363 = vsel %vm298, %v287, 0
        %v366 = vsel %vm298, %v288, 0
        %v369 = vsel %vm298, %v289, 0
        %v372 = vsel %vm298, %v290, 0
        %v375 = vsel %vm298, %v291, 0
        %v378 = vsel %vm298, %v292, 0
        %v381 = vsel %vm298, %v293, 0
        %v384 = vsel %vm298, %v294, 0
        %v387 = vsel %vm298, %v295, 0
        %v390 = vsel %vm298, %v296, 0
        %v393 = vsel %vm298, %v297, 0
        %vm395 = vcmask 1043456
        %v397 = vsel %vm395, %v224, 0
        %399 = vmatprep.subr.mxu0 0.0
        %400 = vmatpush1.msra.mxu0 0.0
        %401 = vmatprep.subr.mxu0 0.0
        %402 = vmatpush1.msra.mxu0 0.0
        %403 = vmatprep.subr.mxu0 0.0
        %404 = vmatpush1.msra.mxu0 0.0
        %405 = vmatprep.subr.mxu0 0.0
        %406 = vmatpush1.msra.mxu0 0.0
        %407 = vmatprep.subr.mxu0 0.0
        %408 = vmatpush1.msra.mxu0 0.0
        %409 = vmatprep.subr.mxu0 0.0
        %410 = vmatpush1.msra.mxu0 0.0
        %411 = vmatprep.subr.mxu0 0.0
        %412 = vmatpush1.msra.mxu0 0.0
        %413 = vmatprep.subr.mxu0 0.0
        %414 = vmatpush1.msra.mxu0 0.0
        %415 = vmatprep.subr.mxu0 0.0
        %416 = vmatpush1.msra.mxu0 0.0
        %417 = vmatprep.subr.mxu0 0.0
        %418 = vmatpush1.msra.mxu0 0.0
        %419 = vmatprep.subr.mxu0 0.0
        %420 = vmatpush1.msra.mxu0 0.0
        %421 = vmatprep.subr.mxu0 0.0
        %422 = vmatpush1.msra.mxu0 0.0
        %423 = vmatprep.subr.mxu0 0.0
        %424 = vmatpush1.msra.mxu0 0.0
        %425 = vmatprep.subr.mxu0 0.0
        %426 = vmatpush1.msra.mxu0 0.0
        %427 = vmatprep.subr.mxu0 0.0
        %428 = vmatpush1.msra.mxu0 0.0
        %429 = vmatprep.subr.mxu0 0.0
        %430 = vmatpush1.msra.mxu0 %v397
        %431 = vmatprep.subr.mxu0 0.0
        %432 = vmatpush2.msra.mxu0 0.0
        %433 = vmatprep.subr.mxu0 0.0
        %434 = vmatpush2.msra.mxu0 0.0
        %435 = vmatprep.subr.mxu0 0.0
        %436 = vmatpush2.msra.mxu0 0.0
        %437 = vmatprep.subr.mxu0 0.0
        %438 = vmatpush2.msra.mxu0 0.0
        %439 = vmatprep.subr.mxu0 0.0
        %440 = vmatpush2.msra.mxu0 0.0
        %441 = vmatprep.subr.mxu0 0.0
        %442 = vmatpush2.msra.mxu0 0.0
        %443 = vmatprep.subr.mxu0 0.0
        %444 = vmatpush2.msra.mxu0 0.0
        %445 = vmatprep.subr.mxu0 0.0
        %446 = vmatpush2.msra.mxu0 0.0
        %447 = vmatprep.subr.mxu0 0.0
        %448 = vmatpush2.msra.mxu0 0.0
        %449 = vmatprep.subr.mxu0 0.0
        %450 = vmatpush2.msra.mxu0 0.0
        %451 = vmatprep.subr.mxu0 0.0
        %452 = vmatpush2.msra.mxu0 0.0
        %453 = vmatprep.subr.mxu0 0.0
        %454 = vmatpush2.msra.mxu0 0.0
        %455 = vmatprep.subr.mxu0 0.0
        %456 = vmatpush2.msra.mxu0 0.0
        %457 = vmatprep.subr.mxu0 0.0
        %458 = vmatpush2.msra.mxu0 0.0
        %459 = vmatprep.subr.mxu0 0.0
        %460 = vmatpush2.msra.mxu0 0.0
        %461 = vmatprep.subr.mxu0 0.0
        %462 = vmatpush2.msra.mxu0 0.0
        %463 = vmatprep.mubr.f32.mxu0 0.0
        %464 = vmatmul.mubr.f32.gmra.mxu0 %v300
        %v465 = vpop.f32.mrf.mxu0
        %v466 = vadd.f32 %v229, %v465
        %v467 = vpop.f32.mrf.mxu0
        %468 = vmatprep.mubr.f32.mxu0 0.0
        %469 = vmatmul.mubr.f32.gmra.mxu0 %v303
        %v470 = vpop.f32.mrf.mxu0
        %v471 = vadd.f32 %v229, %v470
        %v472 = vpop.f32.mrf.mxu0
        %473 = vmatprep.mubr.f32.mxu0 0.0
        %474 = vmatmul.mubr.f32.gmra.mxu0 %v306
        %v475 = vpop.f32.mrf.mxu0
        %v476 = vadd.f32 %v229, %v475
        %v477 = vpop.f32.mrf.mxu0
        %478 = vmatprep.mubr.f32.mxu0 0.0
        %479 = vmatmul.mubr.f32.gmra.mxu0 %v309
        %v480 = vpop.f32.mrf.mxu0
        %v481 = vadd.f32 %v229, %v480
        %v482 = vpop.f32.mrf.mxu0
        %483 = vmatprep.mubr.f32.mxu0 0.0
        %484 = vmatmul.mubr.f32.gmra.mxu0 %v312
        %v485 = vpop.f32.mrf.mxu0
        %v486 = vadd.f32 %v229, %v485
        %v487 = vpop.f32.mrf.mxu0
        %488 = vmatprep.mubr.f32.mxu0 0.0
        %489 = vmatmul.mubr.f32.gmra.mxu0 %v315
        %v490 = vpop.f32.mrf.mxu0
        %v491 = vadd.f32 %v229, %v490
        %v492 = vpop.f32.mrf.mxu0
        %493 = vmatprep.mubr.f32.mxu0 0.0
        %494 = vmatmul.mubr.f32.gmra.mxu0 %v318
        %v495 = vpop.f32.mrf.mxu0
        %v496 = vadd.f32 %v229, %v495
        %v497 = vpop.f32.mrf.mxu0
        %498 = vmatprep.mubr.f32.mxu0 0.0
        %499 = vmatmul.mubr.f32.gmra.mxu0 %v321
        %v500 = vpop.f32.mrf.mxu0
        %v501 = vadd.f32 %v229, %v500
        %v502 = vpop.f32.mrf.mxu0
        %503 = vmatprep.mubr.f32.mxu0 0.0
        %504 = vmatmul.mubr.f32.gmra.mxu0 %v324
        %v505 = vpop.f32.mrf.mxu0
        %v506 = vadd.f32 %v229, %v505
        %v507 = vpop.f32.mrf.mxu0
        %508 = vmatprep.mubr.f32.mxu0 0.0
        %509 = vmatmul.mubr.f32.gmra.mxu0 %v327
        %v510 = vpop.f32.mrf.mxu0
        %v511 = vadd.f32 %v229, %v510
        %v512 = vpop.f32.mrf.mxu0
        %513 = vmatprep.mubr.f32.mxu0 0.0
        %514 = vmatmul.mubr.f32.gmra.mxu0 %v330
        %v515 = vpop.f32.mrf.mxu0
        %v516 = vadd.f32 %v229, %v515
        %v517 = vpop.f32.mrf.mxu0
        %518 = vmatprep.mubr.f32.mxu0 0.0
        %519 = vmatmul.mubr.f32.gmra.mxu0 %v333
        %v520 = vpop.f32.mrf.mxu0
        %v521 = vadd.f32 %v229, %v520
        %v522 = vpop.f32.mrf.mxu0
        %523 = vmatprep.mubr.f32.mxu0 0.0
        %524 = vmatmul.mubr.f32.gmra.mxu0 %v336
        %v525 = vpop.f32.mrf.mxu0
        %v526 = vadd.f32 %v229, %v525
        %v527 = vpop.f32.mrf.mxu0
        %528 = vmatprep.mubr.f32.mxu0 0.0
        %529 = vmatmul.mubr.f32.gmra.mxu0 %v339
        %v530 = vpop.f32.mrf.mxu0
        %v531 = vadd.f32 %v229, %v530
        %v532 = vpop.f32.mrf.mxu0
        %533 = vmatprep.mubr.f32.mxu0 0.0
        %534 = vmatmul.mubr.f32.gmra.mxu0 %v342
        %v535 = vpop.f32.mrf.mxu0
        %v536 = vadd.f32 %v229, %v535
        %v537 = vpop.f32.mrf.mxu0
        %538 = vmatprep.mubr.f32.mxu0 0.0
        %539 = vmatmul.mubr.f32.gmra.mxu0 %v345
        %v540 = vpop.f32.mrf.mxu0
        %v541 = vadd.f32 %v229, %v540
        %v542 = vpop.f32.mrf.mxu0
        %543 = vmatprep.mubr.f32.mxu0 0.0
        %544 = vmatmul.mubr.f32.gmra.mxu0 %v348
        %v545 = vpop.f32.mrf.mxu0
        %v546 = vadd.f32 %v229, %v545
        %v547 = vpop.f32.mrf.mxu0
        %548 = vmatprep.mubr.f32.mxu0 0.0
        %549 = vmatmul.mubr.f32.gmra.mxu0 %v351
        %v550 = vpop.f32.mrf.mxu0
        %v551 = vadd.f32 %v229, %v550
        %v552 = vpop.f32.mrf.mxu0
        %553 = vmatprep.mubr.f32.mxu0 0.0
        %554 = vmatmul.mubr.f32.gmra.mxu0 %v354
        %v555 = vpop.f32.mrf.mxu0
        %v556 = vadd.f32 %v229, %v555
        %v557 = vpop.f32.mrf.mxu0
        %558 = vmatprep.mubr.f32.mxu0 0.0
        %559 = vmatmul.mubr.f32.gmra.mxu0 %v357
        %v560 = vpop.f32.mrf.mxu0
        %v561 = vadd.f32 %v229, %v560
        %v562 = vpop.f32.mrf.mxu0
        %563 = vmatprep.mubr.f32.mxu0 0.0
        %564 = vmatmul.mubr.f32.gmra.mxu0 %v360
        %v565 = vpop.f32.mrf.mxu0
        %v566 = vadd.f32 %v229, %v565
        %v567 = vpop.f32.mrf.mxu0
        %568 = vmatprep.mubr.f32.mxu0 0.0
        %569 = vmatmul.mubr.f32.gmra.mxu0 %v363
        %v570 = vpop.f32.mrf.mxu0
        %v571 = vadd.f32 %v229, %v570
        %v572 = vpop.f32.mrf.mxu0
        %573 = vmatprep.mubr.f32.mxu0 0.0
        %574 = vmatmul.mubr.f32.gmra.mxu0 %v366
        %v575 = vpop.f32.mrf.mxu0
        %v576 = vadd.f32 %v229, %v575
        %v577 = vpop.f32.mrf.mxu0
        %578 = vmatprep.mubr.f32.mxu0 0.0
        %579 = vmatmul.mubr.f32.gmra.mxu0 %v369
        %v580 = vpop.f32.mrf.mxu0
        %v581 = vadd.f32 %v229, %v580
        %v582 = vpop.f32.mrf.mxu0
        %583 = vmatprep.mubr.f32.mxu0 0.0
        %584 = vmatmul.mubr.f32.gmra.mxu0 %v372
        %v585 = vpop.f32.mrf.mxu0
        %v586 = vadd.f32 %v229, %v585
        %v587 = vpop.f32.mrf.mxu0
        %588 = vmatprep.mubr.f32.mxu0 0.0
        %589 = vmatmul.mubr.f32.gmra.mxu0 %v375
        %v590 = vpop.f32.mrf.mxu0
        %v591 = vadd.f32 %v229, %v590
        %v592 = vpop.f32.mrf.mxu0
        %593 = vmatprep.mubr.f32.mxu0 0.0
        %594 = vmatmul.mubr.f32.gmra.mxu0 %v378
        %v595 = vpop.f32.mrf.mxu0
        %v596 = vadd.f32 %v229, %v595
        %v597 = vpop.f32.mrf.mxu0
        %598 = vmatprep.mubr.f32.mxu0 0.0
        %599 = vmatmul.mubr.f32.gmra.mxu0 %v381
        %v600 = vpop.f32.mrf.mxu0
        %v601 = vadd.f32 %v229, %v600
        %v602 = vpop.f32.mrf.mxu0
        %603 = vmatprep.mubr.f32.mxu0 0.0
        %604 = vmatmul.mubr.f32.gmra.mxu0 %v384
        %v605 = vpop.f32.mrf.mxu0
        %v606 = vadd.f32 %v229, %v605
        %v607 = vpop.f32.mrf.mxu0
        %608 = vmatprep.mubr.f32.mxu0 0.0
        %609 = vmatmul.mubr.f32.gmra.mxu0 %v387
        %v610 = vpop.f32.mrf.mxu0
        %v611 = vadd.f32 %v229, %v610
        %v612 = vpop.f32.mrf.mxu0
        %613 = vmatprep.mubr.f32.mxu0 0.0
        %614 = vmatmul.mubr.f32.gmra.mxu0 %v390
        %v615 = vpop.f32.mrf.mxu0
        %v616 = vadd.f32 %v229, %v615
        %v617 = vpop.f32.mrf.mxu0
        %618 = vmatprep.mubr.f32.mxu0 0.0
        %619 = vmatmul.mubr.f32.gmra.mxu0 %v393
        %v620 = vpop.f32.mrf.mxu0
        %v621 = vadd.f32 %v229, %v620
        %v622 = vpop.f32.mrf.mxu0
        %623 = vdwg.mxu0
        %vm624 = vcmask 130048
        %625 = vst.msk [vmem:[%s219] sm:$0xff] %vm624, %v466
        %626 = vst.msk [vmem:[%s219 + $0x8] sm:$0xff] %vm624, %v471
        %627 = vst.msk [vmem:[%s219 + $0x20] sm:$0xff] %vm624, %v476
        %628 = vst.msk [vmem:[%s219 + $0x28] sm:$0xff] %vm624, %v481
        %629 = vst.msk [vmem:[%s219 + $0x40] sm:$0xff] %vm624, %v486
        %630 = vst.msk [vmem:[%s219 + $0x48] sm:$0xff] %vm624, %v491
        %631 = vst.msk [vmem:[%s219 + $0x60] sm:$0xff] %vm624, %v496
        %632 = vst.msk [vmem:[%s219 + $0x68] sm:$0xff] %vm624, %v501
        %633 = vst.msk [vmem:[%s219 + $0x80] sm:$0xff] %vm624, %v506
        %634 = vst.msk [vmem:[%s219 + $0x88] sm:$0xff] %vm624, %v511
        %635 = vst.msk [vmem:[%s219 + $0xa0] sm:$0xff] %vm624, %v516
        %636 = vst.msk [vmem:[%s219 + $0xa8] sm:$0xff] %vm624, %v521
        %637 = vst.msk [vmem:[%s219 + $0xc0] sm:$0xff] %vm624, %v526
        %638 = vst.msk [vmem:[%s219 + $0xc8] sm:$0xff] %vm624, %v531
        %639 = vst.msk [vmem:[%s219 + $0xe0] sm:$0xff] %vm624, %v536
        %640 = vst.msk [vmem:[%s219 + $0xe8] sm:$0xff] %vm624, %v541
        %641 = vst.msk [vmem:[%s219 + $0x100] sm:$0xff] %vm624, %v546
        %642 = vst.msk [vmem:[%s219 + $0x108] sm:$0xff] %vm624, %v551
        %643 = vst.msk [vmem:[%s219 + $0x120] sm:$0xff] %vm624, %v556
        %644 = vst.msk [vmem:[%s219 + $0x128] sm:$0xff] %vm624, %v561
        %645 = vst.msk [vmem:[%s219 + $0x140] sm:$0xff] %vm624, %v566
        %646 = vst.msk [vmem:[%s219 + $0x148] sm:$0xff] %vm624, %v571
        %647 = vst.msk [vmem:[%s219 + $0x160] sm:$0xff] %vm624, %v576
        %648 = vst.msk [vmem:[%s219 + $0x168] sm:$0xff] %vm624, %v581
        %649 = vst.msk [vmem:[%s219 + $0x180] sm:$0xff] %vm624, %v586
        %650 = vst.msk [vmem:[%s219 + $0x188] sm:$0xff] %vm624, %v591
        %651 = vst.msk [vmem:[%s219 + $0x1a0] sm:$0xff] %vm624, %v596
        %652 = vst.msk [vmem:[%s219 + $0x1a8] sm:$0xff] %vm624, %v601
        %653 = vst.msk [vmem:[%s219 + $0x1c0] sm:$0xff] %vm624, %v606
        %654 = vst.msk [vmem:[%s219 + $0x1c8] sm:$0xff] %vm624, %v611
        %655 = vst.msk [vmem:[%s219 + $0x1e0] sm:$0xff] %vm624, %v616
        %656 = vst.msk [vmem:[%s219 + $0x1e8] sm:$0xff] %vm624, %v621
        %s657 = scalar_lea.vmem [#allocation5], 4
        %v658 = vld [vmem:[%s657] sm:$0xf]
        %v660 = vsel %vm395, %v658, 0
        %662 = vmatprep.subr.mxu0 0.0
        %663 = vmatpush1.msra.mxu0 0.0
        %664 = vmatprep.subr.mxu0 0.0
        %665 = vmatpush1.msra.mxu0 0.0
        %666 = vmatprep.subr.mxu0 0.0
        %667 = vmatpush1.msra.mxu0 0.0
        %668 = vmatprep.subr.mxu0 0.0
        %669 = vmatpush1.msra.mxu0 0.0
        %670 = vmatprep.subr.mxu0 0.0
        %671 = vmatpush1.msra.mxu0 0.0
        %672 = vmatprep.subr.mxu0 0.0
        %673 = vmatpush1.msra.mxu0 0.0
        %674 = vmatprep.subr.mxu0 0.0
        %675 = vmatpush1.msra.mxu0 0.0
        %676 = vmatprep.subr.mxu0 0.0
        %677 = vmatpush1.msra.mxu0 0.0
        %678 = vmatprep.subr.mxu0 0.0
        %679 = vmatpush1.msra.mxu0 0.0
        %680 = vmatprep.subr.mxu0 0.0
        %681 = vmatpush1.msra.mxu0 0.0
        %682 = vmatprep.subr.mxu0 0.0
        %683 = vmatpush1.msra.mxu0 0.0
        %684 = vmatprep.subr.mxu0 0.0
        %685 = vmatpush1.msra.mxu0 0.0
        %686 = vmatprep.subr.mxu0 0.0
        %687 = vmatpush1.msra.mxu0 0.0
        %688 = vmatprep.subr.mxu0 0.0
        %689 = vmatpush1.msra.mxu0 0.0
        %690 = vmatprep.subr.mxu0 0.0
        %691 = vmatpush1.msra.mxu0 0.0
        %692 = vmatprep.subr.mxu0 0.0
        %693 = vmatpush1.msra.mxu0 %v660
        %694 = vmatprep.subr.mxu0 0.0
        %695 = vmatpush2.msra.mxu0 0.0
        %696 = vmatprep.subr.mxu0 0.0
        %697 = vmatpush2.msra.mxu0 0.0
        %698 = vmatprep.subr.mxu0 0.0
        %699 = vmatpush2.msra.mxu0 0.0
        %700 = vmatprep.subr.mxu0 0.0
        %701 = vmatpush2.msra.mxu0 0.0
        %702 = vmatprep.subr.mxu0 0.0
        %703 = vmatpush2.msra.mxu0 0.0
        %704 = vmatprep.subr.mxu0 0.0
        %705 = vmatpush2.msra.mxu0 0.0
        %706 = vmatprep.subr.mxu0 0.0
        %707 = vmatpush2.msra.mxu0 0.0
        %708 = vmatprep.subr.mxu0 0.0
        %709 = vmatpush2.msra.mxu0 0.0
        %710 = vmatprep.subr.mxu0 0.0
        %711 = vmatpush2.msra.mxu0 0.0
        %712 = vmatprep.subr.mxu0 0.0
        %713 = vmatpush2.msra.mxu0 0.0
        %714 = vmatprep.subr.mxu0 0.0
        %715 = vmatpush2.msra.mxu0 0.0
        %716 = vmatprep.subr.mxu0 0.0
        %717 = vmatpush2.msra.mxu0 0.0
        %718 = vmatprep.subr.mxu0 0.0
        %719 = vmatpush2.msra.mxu0 0.0
        %720 = vmatprep.subr.mxu0 0.0
        %721 = vmatpush2.msra.mxu0 0.0
        %722 = vmatprep.subr.mxu0 0.0
        %723 = vmatpush2.msra.mxu0 0.0
        %724 = vmatprep.subr.mxu0 0.0
        %725 = vmatpush2.msra.mxu0 0.0
        %726 = vmatprep.mubr.f32.mxu0 0.0
        %727 = vmatmul.mubr.f32.gmra.mxu0 %v300
        %v728 = vpop.f32.mrf.mxu0
        %v729 = vadd.f32 %v229, %v728
        %v730 = vpop.f32.mrf.mxu0
        %731 = vmatprep.mubr.f32.mxu0 0.0
        %732 = vmatmul.mubr.f32.gmra.mxu0 %v303
        %v733 = vpop.f32.mrf.mxu0
        %v734 = vadd.f32 %v229, %v733
        %v735 = vpop.f32.mrf.mxu0
        %736 = vmatprep.mubr.f32.mxu0 0.0
        %737 = vmatmul.mubr.f32.gmra.mxu0 %v306
        %v738 = vpop.f32.mrf.mxu0
        %v739 = vadd.f32 %v229, %v738
        %v740 = vpop.f32.mrf.mxu0
        %741 = vmatprep.mubr.f32.mxu0 0.0
        %742 = vmatmul.mubr.f32.gmra.mxu0 %v309
        %v743 = vpop.f32.mrf.mxu0
        %v744 = vadd.f32 %v229, %v743
        %v745 = vpop.f32.mrf.mxu0
        %746 = vmatprep.mubr.f32.mxu0 0.0
        %747 = vmatmul.mubr.f32.gmra.mxu0 %v312
        %v748 = vpop.f32.mrf.mxu0
        %v749 = vadd.f32 %v229, %v748
        %v750 = vpop.f32.mrf.mxu0
        %751 = vmatprep.mubr.f32.mxu0 0.0
        %752 = vmatmul.mubr.f32.gmra.mxu0 %v315
        %v753 = vpop.f32.mrf.mxu0
        %v754 = vadd.f32 %v229, %v753
        %v755 = vpop.f32.mrf.mxu0
        %756 = vmatprep.mubr.f32.mxu0 0.0
        %757 = vmatmul.mubr.f32.gmra.mxu0 %v318
        %v758 = vpop.f32.mrf.mxu0
        %v759 = vadd.f32 %v229, %v758
        %v760 = vpop.f32.mrf.mxu0
        %761 = vmatprep.mubr.f32.mxu0 0.0
        %762 = vmatmul.mubr.f32.gmra.mxu0 %v321
        %v763 = vpop.f32.mrf.mxu0
        %v764 = vadd.f32 %v229, %v763
        %v765 = vpop.f32.mrf.mxu0
        %766 = vmatprep.mubr.f32.mxu0 0.0
        %767 = vmatmul.mubr.f32.gmra.mxu0 %v324
        %v768 = vpop.f32.mrf.mxu0
        %v769 = vadd.f32 %v229, %v768
        %v770 = vpop.f32.mrf.mxu0
        %771 = vmatprep.mubr.f32.mxu0 0.0
        %772 = vmatmul.mubr.f32.gmra.mxu0 %v327
        %v773 = vpop.f32.mrf.mxu0
        %v774 = vadd.f32 %v229, %v773
        %v775 = vpop.f32.mrf.mxu0
        %776 = vmatprep.mubr.f32.mxu0 0.0
        %777 = vmatmul.mubr.f32.gmra.mxu0 %v330
        %v778 = vpop.f32.mrf.mxu0
        %v779 = vadd.f32 %v229, %v778
        %v780 = vpop.f32.mrf.mxu0
        %781 = vmatprep.mubr.f32.mxu0 0.0
        %782 = vmatmul.mubr.f32.gmra.mxu0 %v333
        %v783 = vpop.f32.mrf.mxu0
        %v784 = vadd.f32 %v229, %v783
        %v785 = vpop.f32.mrf.mxu0
        %786 = vmatprep.mubr.f32.mxu0 0.0
        %787 = vmatmul.mubr.f32.gmra.mxu0 %v336
        %v788 = vpop.f32.mrf.mxu0
        %v789 = vadd.f32 %v229, %v788
        %v790 = vpop.f32.mrf.mxu0
        %791 = vmatprep.mubr.f32.mxu0 0.0
        %792 = vmatmul.mubr.f32.gmra.mxu0 %v339
        %v793 = vpop.f32.mrf.mxu0
        %v794 = vadd.f32 %v229, %v793
        %v795 = vpop.f32.mrf.mxu0
        %796 = vmatprep.mubr.f32.mxu0 0.0
        %797 = vmatmul.mubr.f32.gmra.mxu0 %v342
        %v798 = vpop.f32.mrf.mxu0
        %v799 = vadd.f32 %v229, %v798
        %v800 = vpop.f32.mrf.mxu0
        %801 = vmatprep.mubr.f32.mxu0 0.0
        %802 = vmatmul.mubr.f32.gmra.mxu0 %v345
        %v803 = vpop.f32.mrf.mxu0
        %v804 = vadd.f32 %v229, %v803
        %v805 = vpop.f32.mrf.mxu0
        %806 = vmatprep.mubr.f32.mxu0 0.0
        %807 = vmatmul.mubr.f32.gmra.mxu0 %v348
        %v808 = vpop.f32.mrf.mxu0
        %v809 = vadd.f32 %v229, %v808
        %v810 = vpop.f32.mrf.mxu0
        %811 = vmatprep.mubr.f32.mxu0 0.0
        %812 = vmatmul.mubr.f32.gmra.mxu0 %v351
        %v813 = vpop.f32.mrf.mxu0
        %v814 = vadd.f32 %v229, %v813
        %v815 = vpop.f32.mrf.mxu0
        %816 = vmatprep.mubr.f32.mxu0 0.0
        %817 = vmatmul.mubr.f32.gmra.mxu0 %v354
        %v818 = vpop.f32.mrf.mxu0
        %v819 = vadd.f32 %v229, %v818
        %v820 = vpop.f32.mrf.mxu0
        %821 = vmatprep.mubr.f32.mxu0 0.0
        %822 = vmatmul.mubr.f32.gmra.mxu0 %v357
        %v823 = vpop.f32.mrf.mxu0
        %v824 = vadd.f32 %v229, %v823
        %v825 = vpop.f32.mrf.mxu0
        %826 = vmatprep.mubr.f32.mxu0 0.0
        %827 = vmatmul.mubr.f32.gmra.mxu0 %v360
        %v828 = vpop.f32.mrf.mxu0
        %v829 = vadd.f32 %v229, %v828
        %v830 = vpop.f32.mrf.mxu0
        %831 = vmatprep.mubr.f32.mxu0 0.0
        %832 = vmatmul.mubr.f32.gmra.mxu0 %v363
        %v833 = vpop.f32.mrf.mxu0
        %v834 = vadd.f32 %v229, %v833
        %v835 = vpop.f32.mrf.mxu0
        %836 = vmatprep.mubr.f32.mxu0 0.0
        %837 = vmatmul.mubr.f32.gmra.mxu0 %v366
        %v838 = vpop.f32.mrf.mxu0
        %v839 = vadd.f32 %v229, %v838
        %v840 = vpop.f32.mrf.mxu0
        %841 = vmatprep.mubr.f32.mxu0 0.0
        %842 = vmatmul.mubr.f32.gmra.mxu0 %v369
        %v843 = vpop.f32.mrf.mxu0
        %v844 = vadd.f32 %v229, %v843
        %v845 = vpop.f32.mrf.mxu0
        %846 = vmatprep.mubr.f32.mxu0 0.0
        %847 = vmatmul.mubr.f32.gmra.mxu0 %v372
        %v848 = vpop.f32.mrf.mxu0
        %v849 = vadd.f32 %v229, %v848
        %v850 = vpop.f32.mrf.mxu0
        %851 = vmatprep.mubr.f32.mxu0 0.0
        %852 = vmatmul.mubr.f32.gmra.mxu0 %v375
        %v853 = vpop.f32.mrf.mxu0
        %v854 = vadd.f32 %v229, %v853
        %v855 = vpop.f32.mrf.mxu0
        %856 = vmatprep.mubr.f32.mxu0 0.0
        %857 = vmatmul.mubr.f32.gmra.mxu0 %v378
        %v858 = vpop.f32.mrf.mxu0
        %v859 = vadd.f32 %v229, %v858
        %v860 = vpop.f32.mrf.mxu0
        %861 = vmatprep.mubr.f32.mxu0 0.0
        %862 = vmatmul.mubr.f32.gmra.mxu0 %v381
        %v863 = vpop.f32.mrf.mxu0
        %v864 = vadd.f32 %v229, %v863
        %v865 = vpop.f32.mrf.mxu0
        %866 = vmatprep.mubr.f32.mxu0 0.0
        %867 = vmatmul.mubr.f32.gmra.mxu0 %v384
        %v868 = vpop.f32.mrf.mxu0
        %v869 = vadd.f32 %v229, %v868
        %v870 = vpop.f32.mrf.mxu0
        %871 = vmatprep.mubr.f32.mxu0 0.0
        %872 = vmatmul.mubr.f32.gmra.mxu0 %v387
        %v873 = vpop.f32.mrf.mxu0
        %v874 = vadd.f32 %v229, %v873
        %v875 = vpop.f32.mrf.mxu0
        %876 = vmatprep.mubr.f32.mxu0 0.0
        %877 = vmatmul.mubr.f32.gmra.mxu0 %v390
        %v878 = vpop.f32.mrf.mxu0
        %v879 = vadd.f32 %v229, %v878
        %v880 = vpop.f32.mrf.mxu0
        %881 = vmatprep.mubr.f32.mxu0 0.0
        %882 = vmatmul.mubr.f32.gmra.mxu0 %v393
        %v883 = vpop.f32.mrf.mxu0
        %v884 = vadd.f32 %v229, %v883
        %v885 = vpop.f32.mrf.mxu0
        %886 = vdwg.mxu0
        %s887 = scalar_lea.vmem %s219, 16 [#allocation7]
        %888 = vst.msk [vmem:[%s887] sm:$0xff] %vm624, %v729
        %889 = vst.msk [vmem:[%s887 + $0x8] sm:$0xff] %vm624, %v734
        %890 = vst.msk [vmem:[%s887 + $0x20] sm:$0xff] %vm624, %v739
        %891 = vst.msk [vmem:[%s887 + $0x28] sm:$0xff] %vm624, %v744
        %892 = vst.msk [vmem:[%s887 + $0x40] sm:$0xff] %vm624, %v749
        %893 = vst.msk [vmem:[%s887 + $0x48] sm:$0xff] %vm624, %v754
        %894 = vst.msk [vmem:[%s887 + $0x60] sm:$0xff] %vm624, %v759
        %895 = vst.msk [vmem:[%s887 + $0x68] sm:$0xff] %vm624, %v764
        %896 = vst.msk [vmem:[%s887 + $0x80] sm:$0xff] %vm624, %v769
        %897 = vst.msk [vmem:[%s887 + $0x88] sm:$0xff] %vm624, %v774
        %898 = vst.msk [vmem:[%s887 + $0xa0] sm:$0xff] %vm624, %v779
        %899 = vst.msk [vmem:[%s887 + $0xa8] sm:$0xff] %vm624, %v784
        %900 = vst.msk [vmem:[%s887 + $0xc0] sm:$0xff] %vm624, %v789
        %901 = vst.msk [vmem:[%s887 + $0xc8] sm:$0xff] %vm624, %v794
        %902 = vst.msk [vmem:[%s887 + $0xe0] sm:$0xff] %vm624, %v799
        %903 = vst.msk [vmem:[%s887 + $0xe8] sm:$0xff] %vm624, %v804
        %904 = vst.msk [vmem:[%s887 + $0x100] sm:$0xff] %vm624, %v809
        %905 = vst.msk [vmem:[%s887 + $0x108] sm:$0xff] %vm624, %v814
        %906 = vst.msk [vmem:[%s887 + $0x120] sm:$0xff] %vm624, %v819
        %907 = vst.msk [vmem:[%s887 + $0x128] sm:$0xff] %vm624, %v824
        %908 = vst.msk [vmem:[%s887 + $0x140] sm:$0xff] %vm624, %v829
        %909 = vst.msk [vmem:[%s887 + $0x148] sm:$0xff] %vm624, %v834
        %910 = vst.msk [vmem:[%s887 + $0x160] sm:$0xff] %vm624, %v839
        %911 = vst.msk [vmem:[%s887 + $0x168] sm:$0xff] %vm624, %v844
        %912 = vst.msk [vmem:[%s887 + $0x180] sm:$0xff] %vm624, %v849
        %913 = vst.msk [vmem:[%s887 + $0x188] sm:$0xff] %vm624, %v854
        %914 = vst.msk [vmem:[%s887 + $0x1a0] sm:$0xff] %vm624, %v859
        %915 = vst.msk [vmem:[%s887 + $0x1a8] sm:$0xff] %vm624, %v864
        %916 = vst.msk [vmem:[%s887 + $0x1c0] sm:$0xff] %vm624, %v869
        %917 = vst.msk [vmem:[%s887 + $0x1c8] sm:$0xff] %vm624, %v874
        %918 = vst.msk [vmem:[%s887 + $0x1e0] sm:$0xff] %vm624, %v879
        %919 = vst.msk [vmem:[%s887 + $0x1e8] sm:$0xff] %vm624, %v884
        %s920 = sand.u32 %s113, 1
        %s921 = scalar_lea.sflag [#allocation4], %s920
        %s922 = sand.u32 %s113, 1
        %s923 = smul.addr %s922, 512
        %s924 = scalar_lea.vmem [#allocation7], %s923
        // Predicated region
        $region41: #{tpu_custom_call.1} parent=31 // pred_check
          %p925 = pneg %p123
        $region42: #{tpu_custom_call.1} parent=31 // pred_check_branch
          %927 = sbr.rel (%p925) target = $region44
        $region43: #{tpu_custom_call.1} parent=31 // pred_region
          %s928 = smul.u32 16, %s26
          %s930 = ssub.s32 8192, 8192
          %931 = vsyncadd %s921, %s930
          %s932 = smul.addr %s928, 4
          %s933 = smul.addr %s25, 64
          %s934 = sadd.s32 %s932, %s933
          %s935 = smul.addr %s934, 128
          %s936 = scalar_lea.hbm %s3, %s935
          %s937 = sshll.u32 %s924, 4
          %s938 = int_to_ptr.vmem [resolvable:$true] %s937
          %943 = dma.vmem_to_hbm [thread:$0]  %s938, 8192, %s936, %s921, 128, 128, 8
        $region44: #{tpu_custom_call.1} parent=31 // pred_fallthru
          _
      $region32: #{tpu_custom_call.1} parent=5 // pred_fallthru
        _
      %p944 = scmp.le.s32.totalorder 2, %s16
      // Predicated region
      $region45: #{tpu_custom_call.1} parent=5 // pred_check
        %p945 = pneg %p944
      $region46: #{tpu_custom_call.1} parent=5 // pred_check_branch
        %947 = sbr.rel (%p945) target = $region48
      $region47: #{tpu_custom_call.1} parent=5 // pred_region
        %s948 = ssub.s32 %s16, 2
        // Predicated region
        $region49: #{tpu_custom_call.1} parent=47 // pred_check
          %p949 = pneg %p129
        $region50: #{tpu_custom_call.1} parent=47 // pred_check_branch
          %951 = sbr.rel (%p949) target = $region52
        $region51: #{tpu_custom_call.1} parent=47 // pred_region
          %s952 = sand.u32 %s114, 1
          %s953 = scalar_lea.sflag [#allocation4], %s952
          %s954 = sand.u32 %s114, 1
          %s955 = smul.addr %s954, 512
          %s956 = scalar_lea.vmem [#allocation7], %s955
          %957 = dma.done %s953, 8192
        $region52: #{tpu_custom_call.1} parent=47 // pred_fallthru
          _
      $region48: #{tpu_custom_call.1} parent=5 // pred_fallthru
        _
    $region6: #{tpu_custom_call.1} parent=1 // loop_footer
      %s20 = sadd.s32 1, %s16
    $region7: #{tpu_custom_call.1} parent=1 // loop_footer_branch
      %15 = sbr.rel target = $region3
    $region8: #{tpu_custom_call.1} parent=1 // loop_exit
      _
    %958 = vsyncpa [#allocation3], 1
    %s959 = scalar_lea.sflag [#allocation3], 1
    %960 = vsyncpa %s959, 1
    %961 = vsyncpa [#allocation6], 1
    %962 = vsyncpa [#allocation4], 1
    %s963 = scalar_lea.sflag [#allocation4], 1
    %964 = vsyncpa %s963, 1

</llo_original>
